<compile_context>
chip_gen: v5e
topology: v5e:2x2
jax: 0.10.0
libtpu: 0.0.40
codegen_flags: <defaults>
</compile_context>

<pallas_src>
import jax
import jax.numpy as jnp
from jax.experimental import pallas as pl
from jax.experimental.pallas import tpu as pltpu

# ---- config (stands in for args.*) ------------------------------------------
FEATDIM = 128        # args.featdim (raw feature dimension)
LATDIM = 32          # args.latdim
N_NODES = 64         # number of rows in feats (demo size)

MAX_ROW_TILE = 512   # rows/step when N is large: fills the 256-row MXU on
                     # v6e/v7x and sits at the measured ~85%-of-roofline tile size
VMEM_INPUT_BUDGET = 8 * 1024 * 1024   # per-input double-buffer budget; safe
                                      # under v7x's 32 MiB scoped-VMEM default


def _round_up(x, m):
    return ((x + m - 1) // m) * m


# ---- kernel: fused projection (flip pre-folded into the projection) ----------
def _proj_kernel(feats_ref, proj_ref, out_ref):
    # feats: (ROW_TILE, FEATDIM) bf16, proj: (FEATDIM, LATDIM) bf16 (columns
    # already flipped), out: (ROW_TILE, LATDIM) f32.  Contraction on the natural
    # last dim -> single lane-contiguous MXU matmul with f32 accumulation; no
    # in-kernel relayout, no accumulator init.
    out_ref[...] = jnp.dot(
        feats_ref[...], proj_ref[...],
        preferred_element_type=jnp.float32).astype(out_ref.dtype)


# ---- wrapper -----------------------------------------------------------------
def feat_projector_project(feats, projection, *, compute_dtype=jnp.bfloat16):
    """proj_embeds = flip(feats @ projection, axis=-1), as one pallas_call."""
    n, featdim = feats.shape
    latdim = projection.shape[1]

    # Fold torch.flip(..., dims=[-1]) into the projection matrix once in the
    # wrapper (free layout plumbing) and cast operands to the compute dtype.
    proj_flipped = jnp.flip(projection, axis=1).astype(compute_dtype)
    feats_c = feats.astype(compute_dtype)

    # Sublane packing: bf16 rows pack in 16s, f32 in 8s.
    sub = 16 if jnp.dtype(compute_dtype).itemsize == 2 else 8

    # Row tile: single step for small inputs; otherwise big tiles capped by a
    # VMEM budget derived for the worst-case chip (v7x: 64 MiB phys / 32 MiB scoped).
    bytes_per_elem = jnp.dtype(compute_dtype).itemsize
    rows_by_vmem = VMEM_INPUT_BUDGET // (2 * featdim * bytes_per_elem)  # double-buffered
    row_cap = max(sub, (rows_by_vmem // sub) * sub)
    if n <= MAX_ROW_TILE:
        row_tile = min(_round_up(n, sub), row_cap)
    else:
        row_tile = min(MAX_ROW_TILE, row_cap)

    n_pad = _round_up(n, row_tile)
    if n_pad != n:
        feats_c = jnp.pad(feats_c, ((0, n_pad - n), (0, 0)))
    grid_steps = n_pad // row_tile

    out = pl.pallas_call(
        _proj_kernel,
        out_shape=jax.ShapeDtypeStruct((n_pad, latdim), jnp.float32),
        grid_spec=pltpu.PrefetchScalarGridSpec(
            num_scalar_prefetch=0,
            grid=(grid_steps,),
            in_specs=[
                pl.BlockSpec((row_tile, featdim), lambda i: (i, 0)),
                pl.BlockSpec((featdim, latdim), lambda i: (0, 0)),
            ],
            out_specs=pl.BlockSpec((row_tile, latdim), lambda i: (i, 0)),
        ),
        compiler_params=pltpu.CompilerParams(
            # Megacore split only pays off once each step carries real HBM
            # traffic; at grid_steps == 1 this is a no-op either way.
            dimension_semantics=("parallel",),
            vmem_limit_bytes=32 * 1024 * 1024,
        ),
    )(feats_c, proj_flipped)

    return out[:n] if n_pad != n else out


def xavier_uniform(key, shape, dtype=jnp.float32):
    # nn.init.xavier_uniform_ for a 2-D tensor.  (torch's fan_in/fan_out
    # convention is swapped relative to this, but sqrt(6/(fan_in+fan_out)) is
    # symmetric, so the distribution is identical.)
    fan_in, fan_out = shape[0], shape[1]
    limit = (6.0 / (fan_in + fan_out)) ** 0.5
    return jax.random.uniform(key, shape, dtype, minval=-limit, maxval=limit)


class FeatProjector:
    """JAX/Pallas port of Feat_Projector (proj_method='uniform', eval mode)."""

    def __init__(self, feats, key):
        projection = xavier_uniform(key, (feats.shape[1], LATDIM))
        # construction-time compute, fully fused in one kernel call
        self.proj_embeds = feat_projector_project(feats, projection)
        self._projection = projection  # kept only for reference checking

    def __call__(self):
        # forward(): return the (detached) cached embeddings
        return self.proj_embeds


if __name__ == "__main__":
    key = jax.random.PRNGKey(0)
    k_feats, k_proj = jax.random.split(key)

    feats = jax.random.normal(k_feats, (N_NODES, FEATDIM), jnp.float32)

    model = FeatProjector(feats, k_proj)
    out = model()                       # forward pass
    out = jax.block_until_ready(out)

    # Reference matching the kernel's compute path (bf16 operands, f32 acc):
    ref_bf16 = jnp.flip(
        jnp.dot(feats.astype(jnp.bfloat16), model._projection.astype(jnp.bfloat16),
                preferred_element_type=jnp.float32),
        axis=-1)
    # Full-f32 reference for semantics (flip(feats @ P, -1)), loose tol for bf16:
    ref_f32 = jnp.flip(jnp.dot(feats, model._projection), axis=-1)

    assert out.shape == (N_NODES, LATDIM)
    assert bool(jnp.all(jnp.isfinite(out)))
    assert bool(jnp.allclose(out, ref_bf16, atol=2e-3, rtol=2e-3))
    assert bool(jnp.allclose(out, ref_f32, atol=1e-1, rtol=1e-1))

    # Also exercise the non-multiple row-count path (wrapper padding + slice).
    n_odd = 67
    feats_odd = jax.random.normal(k_feats, (n_odd, FEATDIM), jnp.float32)
    out_odd = jax.block_until_ready(
        feat_projector_project(feats_odd, model._projection))
    ref_odd = jnp.flip(
        jnp.dot(feats_odd.astype(jnp.bfloat16),
                model._projection.astype(jnp.bfloat16),
                preferred_element_type=jnp.float32),
        axis=-1)
    assert out_odd.shape == (n_odd, LATDIM)
    assert bool(jnp.allclose(out_odd, ref_odd, atol=2e-3, rtol=2e-3))

    print("KERNEL_OK")
</pallas_src>

<mosaic_0001>
module attributes {stable_mosaic.version = 11 : i64} {
  func.func @_proj_kernel(%arg0: i32, %arg1: memref<64x128xbf16, #tpu.memory_space<vmem>>, %arg2: memref<128x32xbf16, #tpu.memory_space<vmem>>, %arg3: memref<64x32xf32, #tpu.memory_space<vmem>>) attributes {dimension_semantics = [#tpu.dimension_semantics<parallel>], iteration_bounds = array<i64: 1>, scalar_prefetch = 0 : i64, scratch_operands = 0 : i64, tpu.core_type = #tpu.core_type<tc>, window_params = [{transform_indices = @transform_0, window_bounds = array<i64: 64, 128>}, {pipeline_mode = #tpu.pipeline_mode<synchronous>, transform_indices = @transform_1, window_bounds = array<i64: 128, 32>}, {transform_indices = @transform_2, window_bounds = array<i64: 64, 32>}]} {
    %c0 = arith.constant 0 : index
    %c0_0 = arith.constant 0 : index
    %0 = vector.load %arg1[%c0, %c0_0] : memref<64x128xbf16, #tpu.memory_space<vmem>>, vector<64x128xbf16>
    %c0_1 = arith.constant 0 : index
    %c0_2 = arith.constant 0 : index
    %1 = vector.load %arg2[%c0_1, %c0_2] : memref<128x32xbf16, #tpu.memory_space<vmem>>, vector<128x32xbf16>
    %cst = arith.constant dense<0.000000e+00> : vector<64x32xf32>
    %2 = tpu.matmul %0, %1, %cst {dimension_numbers = #tpu.dot_dimension_numbers<[1], [0], [0], [1], [0, 0, 1, 1], [], []>} : vector<64x128xbf16>, vector<128x32xbf16>, vector<64x32xf32> -> vector<64x32xf32>
    %c0_3 = arith.constant 0 : index
    %c0_4 = arith.constant 0 : index
    %3 = vector.load %arg3[%c0_3, %c0_4] : memref<64x32xf32, #tpu.memory_space<vmem>>, vector<64x32xf32>
    tpu.vector_store %arg3[%c0_3, %c0_4], %2 {strides = array<i32>} : memref<64x32xf32, #tpu.memory_space<vmem>>, vector<64x32xf32>,
    return
  }
  func.func @transform_0(%arg0: i32) -> (i32, i32) {
    %c0_i32 = arith.constant 0 : i32
    %c0_i32_0 = arith.constant 0 : i32
    return %arg0, %c0_i32 : i32, i32
  }
  func.func @transform_1(%arg0: i32) -> (i32, i32) {
    %c0_i32 = arith.constant 0 : i32
    %c0_i32_0 = arith.constant 0 : i32
    %c0_i32_1 = arith.constant 0 : i32
    return %c0_i32, %c0_i32_0 : i32, i32
  }
  func.func @transform_2(%arg0: i32) -> (i32, i32) {
    %c0_i32 = arith.constant 0 : i32
    %c0_i32_0 = arith.constant 0 : i32
    return %arg0, %c0_i32 : i32, i32
  }
}

</mosaic_0001>

<llo_original>
// kernel: tpu_custom_call.1
$region0: #{tpu_custom_call.1}
  #allocation0 [shape = 'u32[]', space=smem, size = 0x4, offset = 0x4, fixed_abs, tag = 'smem constant byte address 0x4 - core index']
  #allocation1 [shape = 'u32[72,128]{1,0:T(1,128)}', space=vmem, size = 0x9000, scoped, tag = 'internal scratch']
  %s0 = inlined_call_operand.vmem [shape: bf16[64,128], index: 0, kind: input, shape index: {}]
  %s1 = inlined_call_operand.vmem [shape: bf16[128,32], index: 1, kind: input, shape index: {}]
  %s2 = inlined_call_operand.vmem [shape: f32[64,32], index: 2, kind: output, shape index: {}]
  %s3 = sld [smem:[#allocation0]]
  $region18: #{tpu_custom_call.1} parent=0
    _
  %s5 = ssub.s32 1, %s3
  %s6 = scalar_select 0, %s5, %s3
  // Predicated region
  $region2: #{tpu_custom_call.1} parent=0 // pred_check
    _
  $region3: #{tpu_custom_call.1} parent=0 // pred_check_branch
    %8 = sbr.rel (0) target = $region5
  $region4: #{tpu_custom_call.1} parent=0 // pred_region
    _
  $region5: #{tpu_custom_call.1} parent=0 // pred_fallthru
    _
  // Predicated region
  $region6: #{tpu_custom_call.1} parent=0 // pred_check
    _
  $region7: #{tpu_custom_call.1} parent=0 // pred_check_branch
    %10 = sbr.rel (0) target = $region9
  $region8: #{tpu_custom_call.1} parent=0 // pred_region
    _
  $region9: #{tpu_custom_call.1} parent=0 // pred_fallthru
    _
  %v11 = vld [vmem:[%s0] sm:$0xf]
  %v12 = vld [vmem:[%s0 + $0x4] sm:$0xf]
  %v13 = vld [vmem:[%s0 + $0x8] sm:$0xf]
  %v14 = vld [vmem:[%s0 + $0xc] sm:$0xf]
  %v15 = vld [vmem:[%s0 + $0x10] sm:$0xf]
  %v16 = vld [vmem:[%s0 + $0x14] sm:$0xf]
  %v17 = vld [vmem:[%s0 + $0x18] sm:$0xf]
  %v18 = vld [vmem:[%s0 + $0x1c] sm:$0xf]
  %v19 = vld [vmem:[%s1] sm:$0xf]
  %v20 = vld [vmem:[%s1 + $0x4] sm:$0xf]
  %v21 = vld [vmem:[%s1 + $0x8] sm:$0xf]
  %v22 = vld [vmem:[%s1 + $0xc] sm:$0xf]
  %v23 = vld [vmem:[%s1 + $0x10] sm:$0xf]
  %v24 = vld [vmem:[%s1 + $0x14] sm:$0xf]
  %v25 = vld [vmem:[%s1 + $0x18] sm:$0xf]
  %v26 = vld [vmem:[%s1 + $0x1c] sm:$0xf]
  %v27 = vld [vmem:[%s1 + $0x20] sm:$0xf]
  %v28 = vld [vmem:[%s1 + $0x24] sm:$0xf]
  %v29 = vld [vmem:[%s1 + $0x28] sm:$0xf]
  %v30 = vld [vmem:[%s1 + $0x2c] sm:$0xf]
  %v31 = vld [vmem:[%s1 + $0x30] sm:$0xf]
  %v32 = vld [vmem:[%s1 + $0x34] sm:$0xf]
  %v33 = vld [vmem:[%s1 + $0x38] sm:$0xf]
  %v34 = vld [vmem:[%s1 + $0x3c] sm:$0xf]
  %v43 = vunpack.c.l.b16 %v11
  %v44 = vunpack.c.l.b16 %v12
  %v45 = vunpack.c.l.b16 %v13
  %v46 = vunpack.c.l.b16 %v14
  %v47 = vunpack.c.l.b16 %v15
  %v48 = vunpack.c.l.b16 %v16
  %v49 = vunpack.c.l.b16 %v17
  %v50 = vunpack.c.l.b16 %v18
  %v51 = vpack.c.b16 %v44, %v43
  %v52 = vpack.c.b16 %v46, %v45
  %v53 = vpack.c.b16 %v48, %v47
  %v54 = vpack.c.b16 %v50, %v49
  %v75 = vunpack.c.l.b16 %v19
  %v76 = vunpack.c.l.b16 %v20
  %v77 = vunpack.c.l.b16 %v21
  %v78 = vunpack.c.l.b16 %v22
  %v79 = vunpack.c.l.b16 %v23
  %v80 = vunpack.c.l.b16 %v24
  %v81 = vunpack.c.l.b16 %v25
  %v82 = vunpack.c.l.b16 %v26
  %v83 = vunpack.c.l.b16 %v27
  %v84 = vunpack.c.l.b16 %v28
  %v85 = vunpack.c.l.b16 %v29
  %v86 = vunpack.c.l.b16 %v30
  %v87 = vunpack.c.l.b16 %v31
  %v88 = vunpack.c.l.b16 %v32
  %v89 = vunpack.c.l.b16 %v33
  %v90 = vunpack.c.l.b16 %v34
  %v91 = vpack.c.b16 %v76, %v75
  %v92 = vpack.c.b16 %v78, %v77
  %v93 = vpack.c.b16 %v80, %v79
  %v94 = vpack.c.b16 %v82, %v81
  %v95 = vpack.c.b16 %v84, %v83
  %v96 = vpack.c.b16 %v86, %v85
  %v97 = vpack.c.b16 %v88, %v87
  %v98 = vpack.c.b16 %v90, %v89
  %107 = vmatpush.bf16.msra.mxu0 %v98
  %108 = vmatpush.bf16.msra.mxu0 %v97
  %109 = vmatpush.bf16.msra.mxu0 %v96
  %110 = vmatpush.bf16.msra.mxu0 %v95
  %111 = vmatpush.bf16.msra.mxu0 %v94
  %112 = vmatpush.bf16.msra.mxu0 %v93
  %113 = vmatpush.bf16.msra.mxu0 %v92
  %114 = vmatpush.bf16.msra.mxu0 %v91
  %115 = vmatmul.bf16.gmra.mxu0 %v51
  %v116 = vpop.f32.mrf.mxu0
  %v117 = vadd.f32 0.0, %v116
  %v118 = vpop.f32.mrf.mxu0
  %v119 = vadd.f32 0.0, %v118
  %120 = vmatmul.bf16.gmra.mxu0 %v52
  %v121 = vpop.f32.mrf.mxu0
  %v122 = vadd.f32 0.0, %v121
  %v123 = vpop.f32.mrf.mxu0
  %v124 = vadd.f32 0.0, %v123
  %125 = vmatmul.bf16.gmra.mxu0 %v53
  %v126 = vpop.f32.mrf.mxu0
  %v127 = vadd.f32 0.0, %v126
  %v128 = vpop.f32.mrf.mxu0
  %v129 = vadd.f32 0.0, %v128
  %130 = vmatmul.bf16.gmra.mxu0 %v54
  %v131 = vpop.f32.mrf.mxu0
  %v132 = vadd.f32 0.0, %v131
  %v133 = vpop.f32.mrf.mxu0
  %v134 = vadd.f32 0.0, %v133
  %135 = vdwg.mxu0
  %vm136 = vcmask 261120
  %137 = vst.msk [vmem:[%s2] sm:$0xff] %vm136, %v117
  %138 = vst.msk [vmem:[%s2 + $0x8] sm:$0xff] %vm136, %v119
  %139 = vst.msk [vmem:[%s2 + $0x10] sm:$0xff] %vm136, %v122
  %140 = vst.msk [vmem:[%s2 + $0x18] sm:$0xff] %vm136, %v124
  %141 = vst.msk [vmem:[%s2 + $0x20] sm:$0xff] %vm136, %v127
  %142 = vst.msk [vmem:[%s2 + $0x28] sm:$0xff] %vm136, %v129
  %143 = vst.msk [vmem:[%s2 + $0x30] sm:$0xff] %vm136, %v132
  %144 = vst.msk [vmem:[%s2 + $0x38] sm:$0xff] %vm136, %v134
  // Predicated region
  $region10: #{tpu_custom_call.1} parent=0 // pred_check
    _
  $region11: #{tpu_custom_call.1} parent=0 // pred_check_branch
    %146 = sbr.rel (0) target = $region13
  $region12: #{tpu_custom_call.1} parent=0 // pred_region
    _
  $region13: #{tpu_custom_call.1} parent=0 // pred_fallthru
    _
  // Predicated region
  $region14: #{tpu_custom_call.1} parent=0 // pred_check
    _
  $region15: #{tpu_custom_call.1} parent=0 // pred_check_branch
    %148 = sbr.rel (0) target = $region17
  $region16: #{tpu_custom_call.1} parent=0 // pred_region
    _
  $region17: #{tpu_custom_call.1} parent=0 // pred_fallthru
    _

</llo_original>
